<compile_context>
chip_gen: v7x
topology: tpu7x:2x2x1
jax: 0.10.0
libtpu: 0.0.40
codegen_flags: <defaults>
</compile_context>

<pallas_src>
import functools

import jax
import jax.numpy as jnp
from jax import lax
from jax.experimental import pallas as pl
from jax.experimental.pallas import tpu as pltpu


def _round_up(x, m):
    return (x + m - 1) // m * m


def _energy_kernel(x_hbm, out_ref, slab_ref, sem, *,
                   energy_type, halo, D, H_pad, W_pad,
                   d_tile, slab_d, n_tiles, ragged):
    """One grid step == one (batch, channel) volume.

    x_hbm   : (B*C, D, H_pad, W_pad) HBM ref (native dtype, memory_space=ANY)
    out_ref : (H_pad, W_pad) f32 VMEM block -- accumulated per-voxel energy plane
    slab_ref: (2*slab_d, H_pad, W_pad) VMEM scratch -- two D-slab buffers
    sem     : (2,) DMA semaphores
    """
    b = pl.program_id(0)

    def slab_start(t):
        if ragged:
            # Clamp so the DMA window [start, start + slab_d) stays inside [0, D).
            return jnp.minimum(t * d_tile, D - slab_d)
        return t * d_tile

    def copy_desc(t, slot):
        return pltpu.make_async_copy(
            x_hbm.at[b, pl.ds(slab_start(t), slab_d)],
            slab_ref.at[pl.ds(slot * slab_d, slab_d)],
            sem.at[slot],
        )

    # Kick off the first slab DMA and zero the accumulator plane.  Every grid
    # step is self-contained so the "parallel" axis may be sharded across TCs.
    copy_desc(0, 0).start()
    out_ref[...] = jnp.zeros_like(out_ref)

    # Aligned neighbour shifts (XLU rotations, wrap at the padded extents).
    # Wrapped/padded positions only affect voxels outside the interior, which
    # the wrapper excludes from the final sum.
    def sh(x, k):   # value at row  h + k
        return pltpu.roll(x, (-k) % H_pad, axis=0)

    def sw(x, k):   # value at lane w + k
        return pltpu.roll(x, (-k) % W_pad, axis=1)

    def plane_energy(load):
        """Unscaled per-voxel energy of one output D-plane.
        load(k) = f32 plane at D-offset (k - halo) from the plane centre."""
        if energy_type == "bending":
            pm2, pm1, p0, pp1, pp2 = (load(k) for k in range(5))
            two_p0 = p0 + p0
            dxx = (pp2 + pm2) - two_p0                  # 4 * d2/dx2
            dyy = (sh(p0, 2) + sh(p0, -2)) - two_p0     # 4 * d2/dy2
            dzz = (sw(p0, 2) + sw(p0, -2)) - two_p0     # 4 * d2/dz2
            a = pp1 - pm1                                # 2 * d/dx
            dxy = sh(a, 1) - sh(a, -1)                  # 4 * d2/dxdy
            dxz = sw(a, 1) - sw(a, -1)                  # 4 * d2/dxdz
            g = sh(p0, 1) - sh(p0, -1)                  # 2 * d/dy
            dyz = sw(g, 1) - sw(g, -1)                  # 4 * d2/dydz
            cross = dxy * dxy + dxz * dxz + dyz * dyz
            return dxx * dxx + dyy * dyy + dzz * dzz + cross + cross
        pm1, p0, pp1 = (load(k) for k in range(3))
        ex = pp1 - pm1                                   # 2 * d/dx
        ey = sh(p0, 1) - sh(p0, -1)                      # 2 * d/dy
        ez = sw(p0, 1) - sw(p0, -1)                      # 2 * d/dz
        if energy_type == "gradient-l2":
            return ex * ex + ey * ey + ez * ez
        return jnp.abs(ex) + jnp.abs(ey) + jnp.abs(ez)   # gradient-l1

    def slab_body(t, carry):
        slot = t % 2
        copy_desc(t, slot).wait()

        # Prefetch the next slab into the other buffer while computing this one.
        @pl.when(t + 1 < n_tiles)
        def _():
            copy_desc(t + 1, 1 - slot).start()

        base = slot * slab_d
        # Ragged last tile: the clamped window re-covers planes already handled
        # by earlier tiles; skip them via the loop lower bound (no masking).
        lo = (t * d_tile - slab_start(t)) if ragged else 0

        def plane_body(i, c):
            def load(k):
                return slab_ref[base + i + k].astype(jnp.float32)
            out_ref[...] += plane_energy(load)
            return c

        return lax.fori_loop(lo, d_tile, plane_body, carry)

    lax.fori_loop(0, n_tiles, slab_body, 0)


def displacement_regularizer(disp, energy_type, *, d_tile=None):
    """Pallas equivalent of DisplacementRegularizer(energy_type)(disp, _).

    disp: [B, 3, D, H, W] displacement field.  Returns a scalar energy.
    """
    if energy_type == "bending":
        halo = 2
    elif energy_type in ("gradient-l2", "gradient-l1"):
        halo = 1
    else:
        raise Exception("Not recognised local regulariser!")

    assert disp.ndim == 5 and disp.shape[1] == 3, "expected [B, 3, D, H, W]"
    B, C, D, H, W = disp.shape
    out_d, out_h, out_w = D - 2 * halo, H - 2 * halo, W - 2 * halo
    assert out_d >= 1 and out_h >= 1 and out_w >= 1, "volume too small"

    # Native dtype (no wrapper-side f32 upcast); pad H/W once to the tile grid
    # so every in-kernel shift/store is (8,128)-aligned and DMAs are contiguous.
    x = disp.reshape(B * C, D, H, W)
    itemsize = jnp.dtype(x.dtype).itemsize
    sub = 8 * max(1, 4 // itemsize)
    H_pad = _round_up(H, sub)
    W_pad = _round_up(W, 128)
    if (H_pad, W_pad) != (H, W):
        x = jnp.pad(x, ((0, 0), (0, 0), (0, H_pad - H), (0, W_pad - W)))

    plane_bytes = H_pad * W_pad * itemsize
    if d_tile is None:
        budget_planes = (12 << 20) // plane_bytes      # ~12 MiB per slab buffer
        td = min(64, max(1, budget_planes - 2 * halo))
    else:
        td = int(d_tile)
    td = max(1, min(td, out_d))
    n_tiles = -(-out_d // td)
    slab_d = td + 2 * halo                              # haloed slab depth (<= D)
    ragged = (out_d % td) != 0

    kernel = functools.partial(
        _energy_kernel, energy_type=energy_type, halo=halo, D=D,
        H_pad=H_pad, W_pad=W_pad, d_tile=td, slab_d=slab_d,
        n_tiles=n_tiles, ragged=ragged)

    slab_total_bytes = 2 * slab_d * plane_bytes
    out_block_bytes = H_pad * W_pad * 4
    vmem_limit = int(max(32 << 20,
                         min(slab_total_bytes + 4 * out_block_bytes + (4 << 20),
                             112 << 20)))

    voxels = B * C * out_d * out_h * out_w
    flops_per_voxel = 24 if energy_type == "bending" else 9
    cost = pl.CostEstimate(
        flops=int(flops_per_voxel * voxels),
        transcendentals=0,
        bytes_accessed=int(B * C * n_tiles * slab_d * H_pad * W_pad * itemsize
                           + B * C * H_pad * W_pad * 4))

    acc = pl.pallas_call(
        kernel,
        out_shape=jax.ShapeDtypeStruct((B * C, H_pad, W_pad), jnp.float32),
        grid_spec=pltpu.PrefetchScalarGridSpec(
            num_scalar_prefetch=0,
            grid=(B * C,),
            # Input stays in HBM; haloed D-slabs are DMA'd manually (double buffered).
            in_specs=[pl.BlockSpec(memory_space=pl.ANY)],
            out_specs=pl.BlockSpec((None, H_pad, W_pad), lambda b: (b, 0, 0)),
            scratch_shapes=[
                pltpu.VMEM((2 * slab_d, H_pad, W_pad), x.dtype),
                pltpu.SemaphoreType.DMA((2,)),
            ],
        ),
        compiler_params=pltpu.CompilerParams(
            dimension_semantics=("parallel",),
            vmem_limit_bytes=vmem_limit,
        ),
        cost_estimate=cost,
    )(x)

    # Final reduction: interior voxels only (excludes padded / wrapped boundary
    # positions), then one folded constant and the mean normalization.
    total = jnp.sum(acc[:, halo:H - halo, halo:W - halo], dtype=jnp.float32)
    denom = jnp.float32(B * C * out_d * out_h * out_w)
    if energy_type == "bending":
        return total * (1.0 / 16.0) / denom              # torch.mean(...)
    if energy_type == "gradient-l2":
        return total * (1.0 / 4.0) / denom / 3.0         # torch.mean(norms)/3
    return total * (1.0 / 2.0) / denom / 3.0             # gradient-l1


class DisplacementRegularizerPallas:
    """Mirrors DisplacementRegularizer.forward(disp, _)."""

    def __init__(self, energy_type):
        self.energy_type = energy_type

    def __call__(self, disp, _=None, **kwargs):
        return displacement_regularizer(disp, self.energy_type, **kwargs)


# ----------------------------- pure-JAX reference -----------------------------
def _ref_grad_dx(fv):
    return (fv[:, 2:, 1:-1, 1:-1] - fv[:, :-2, 1:-1, 1:-1]) / 2


def _ref_grad_dy(fv):
    return (fv[:, 1:-1, 2:, 1:-1] - fv[:, 1:-1, :-2, 1:-1]) / 2


def _ref_grad_dz(fv):
    return (fv[:, 1:-1, 1:-1, 2:] - fv[:, 1:-1, 1:-1, :-2]) / 2


def _ref_txyz(T, fn):
    return jnp.stack([fn(T[:, i]) for i in range(3)], axis=1)


def _displacement_regularizer_ref(disp, energy_type):
    disp = disp.astype(jnp.float32)
    dTdx = _ref_txyz(disp, _ref_grad_dx)
    dTdy = _ref_txyz(disp, _ref_grad_dy)
    dTdz = _ref_txyz(disp, _ref_grad_dz)
    if energy_type == "bending":
        dTdxx = _ref_txyz(dTdx, _ref_grad_dx)
        dTdyy = _ref_txyz(dTdy, _ref_grad_dy)
        dTdzz = _ref_txyz(dTdz, _ref_grad_dz)
        dTdxy = _ref_txyz(dTdx, _ref_grad_dy)
        dTdyz = _ref_txyz(dTdy, _ref_grad_dz)
        dTdxz = _ref_txyz(dTdx, _ref_grad_dz)
        return jnp.mean(dTdxx ** 2 + dTdyy ** 2 + dTdzz ** 2
                        + 2 * dTdxy ** 2 + 2 * dTdxz ** 2 + 2 * dTdyz ** 2)
    elif energy_type == "gradient-l2":
        norms = dTdx ** 2 + dTdy ** 2 + dTdz ** 2
        return jnp.mean(norms) / 3.0
    else:  # gradient-l1
        norms = jnp.abs(dTdx) + jnp.abs(dTdy) + jnp.abs(dTdz)
        return jnp.mean(norms) / 3.0


if __name__ == "__main__":
    import numpy as np

    key = jax.random.PRNGKey(0)
    B, C, D, H, W = 2, 3, 16, 16, 16
    disp = jax.random.normal(key, (B, C, D, H, W), dtype=jnp.float32)

    # Small d_tile exercises the multi-slab double-buffered path and the
    # ragged-last-tile (clamped window + dynamic loop bound) path.
    for energy_type in ("bending", "gradient-l2", "gradient-l1"):
        out = jax.block_until_ready(
            displacement_regularizer(disp, energy_type, d_tile=8))
        ref = jax.block_until_ready(_displacement_regularizer_ref(disp, energy_type))
        np.testing.assert_allclose(np.asarray(out), np.asarray(ref),
                                   rtol=1e-4, atol=1e-6)

    # Default tile (single slab covers the whole interior at this size).
    out = jax.block_until_ready(
        DisplacementRegularizerPallas("gradient-l2")(disp, None))
    ref = jax.block_until_ready(_displacement_regularizer_ref(disp, "gradient-l2"))
    np.testing.assert_allclose(np.asarray(out), np.asarray(ref),
                               rtol=1e-4, atol=1e-6)

    # Native-dtype DMA path (bf16 input, f32 in-kernel math).
    disp_bf16 = disp.astype(jnp.bfloat16)
    out = jax.block_until_ready(
        displacement_regularizer(disp_bf16, "gradient-l1", d_tile=8))
    ref = jax.block_until_ready(
        _displacement_regularizer_ref(disp_bf16, "gradient-l1"))
    np.testing.assert_allclose(np.asarray(out), np.asarray(ref),
                               rtol=5e-4, atol=1e-5)

    print("KERNEL_OK")
</pallas_src>

<mosaic_0001>
module attributes {stable_mosaic.version = 11 : i64} {
  func.func @_energy_kernel(%arg0: i32, %arg1: memref<6x16x16x128xf32, #tpu.memory_space<any>>, %arg2: memref<1x16x128xf32, #tpu.memory_space<vmem>>, %arg3: memref<24x16x128xf32, #tpu.memory_space<vmem>>, %arg4: memref<2x!tpu.dma_semaphore, #tpu.memory_space<semaphore_mem>>) attributes {dimension_semantics = [#tpu.dimension_semantics<parallel>], iteration_bounds = array<i64: 6>, scalar_prefetch = 0 : i64, scratch_operands = 2 : i64, tpu.core_type = #tpu.core_type<tc>, window_params = [{}, {transform_indices = @transform_1, window_bounds = array<i64: 1, 16, 128>}]} {
    %c0_i32 = arith.constant 0 : i32
    %c4_i32 = arith.constant 4 : i32
    %0 = arith.minsi %c0_i32, %c4_i32 : i32
    %c0_i32_0 = arith.constant 0 : i32
    %c0_i32_1 = arith.constant 0 : i32
    %c0_i32_2 = arith.constant 0 : i32
    %1 = tpu.memref_slice %arg1[%arg0, %0, %c0_i32_1, %c0_i32_2] : memref<6x16x16x128xf32, #tpu.memory_space<any>> -> memref<1x12x16x128xf32, #tpu.memory_space<any>>
    %2 = tpu.memref_squeeze %1 : memref<1x12x16x128xf32, #tpu.memory_space<any>> -> memref<12x16x128xf32, #tpu.memory_space<any>>
    %c0_i32_3 = arith.constant 0 : i32
    %c0_i32_4 = arith.constant 0 : i32
    %c0_i32_5 = arith.constant 0 : i32
    %3 = tpu.memref_slice %arg3[%c0_i32_3, %c0_i32_4, %c0_i32_5] : memref<24x16x128xf32, #tpu.memory_space<vmem>> -> memref<12x16x128xf32, #tpu.memory_space<vmem>>
    %4 = tpu.memref_slice %arg4[%c0_i32_0] : memref<2x!tpu.dma_semaphore, #tpu.memory_space<semaphore_mem>> -> memref<1x!tpu.dma_semaphore, #tpu.memory_space<semaphore_mem>>
    %5 = tpu.memref_squeeze %4 : memref<1x!tpu.dma_semaphore, #tpu.memory_space<semaphore_mem>> -> memref<!tpu.dma_semaphore, #tpu.memory_space<semaphore_mem>>
    tpu.enqueue_dma source(%2 : memref<12x16x128xf32, #tpu.memory_space<any>>) target(%3 : memref<12x16x128xf32, #tpu.memory_space<vmem>>) target_semaphore(%5 : memref<!tpu.dma_semaphore, #tpu.memory_space<semaphore_mem>>)
    %cst = arith.constant 0.000000e+00 : f32
    %6 = vector.broadcast %cst : f32 to vector<16x128xf32>
    %c0 = arith.constant 0 : index
    %c0_6 = arith.constant 0 : index
    %c0_7 = arith.constant 0 : index
    %7 = vector.load %arg2[%c0, %c0_6, %c0_7] : memref<1x16x128xf32, #tpu.memory_space<vmem>>, vector<1x16x128xf32>
    %8 = vector.shape_cast %7 : vector<1x16x128xf32> to vector<16x128xf32>
    %9 = vector.shape_cast %6 : vector<16x128xf32> to vector<1x16x128xf32>
    tpu.vector_store %arg2[%c0, %c0_6, %c0_7], %9 {strides = array<i32>} : memref<1x16x128xf32, #tpu.memory_space<vmem>>, vector<1x16x128xf32>,
    %c0_i32_8 = arith.constant 0 : i32
    %c0_i32_9 = arith.constant 0 : i32
    %c2_i32 = arith.constant 2 : i32
    %10 = arith.addi %c0_i32_9, %c2_i32 : i32
    %c1_i32 = arith.constant 1 : i32
    scf.for %arg5 = %c0_i32_9 to %10 step %c1_i32  : i32 {
      %c2_i32_11 = arith.constant 2 : i32
      %c0_i32_12 = arith.constant 0 : i32
      %11 = arith.cmpi eq, %c2_i32_11, %c0_i32_12 : i32
      %c1_i32_13 = arith.constant 1 : i32
      %12 = arith.select %11, %c1_i32_13, %c2_i32_11 : i32
      %13 = arith.remsi %arg5, %12 : i32
      %c0_i32_14 = arith.constant 0 : i32
      %14 = arith.cmpi ne, %13, %c0_i32_14 : i32
      %c0_i32_15 = arith.constant 0 : i32
      %15 = arith.cmpi slt, %13, %c0_i32_15 : i32
      %c0_i32_16 = arith.constant 0 : i32
      %16 = arith.cmpi slt, %12, %c0_i32_16 : i32
      %17 = arith.xori %15, %16 : i1
      %18 = arith.andi %17, %14 : i1
      %19 = arith.addi %13, %12 : i32
      %20 = arith.select %18, %19, %13 : i32
      %c8_i32 = arith.constant 8 : i32
      %21 = arith.muli %arg5, %c8_i32 : i32
      %c4_i32_17 = arith.constant 4 : i32
      %22 = arith.minsi %21, %c4_i32_17 : i32
      %c12_i32 = arith.constant 12 : i32
      %23 = arith.muli %20, %c12_i32 : i32
      %c0_i32_18 = arith.constant 0 : i32
      %c0_i32_19 = arith.constant 0 : i32
      %24 = tpu.memref_slice %arg1[%arg0, %22, %c0_i32_18, %c0_i32_19] : memref<6x16x16x128xf32, #tpu.memory_space<any>> -> memref<1x12x16x128xf32, #tpu.memory_space<any>>
      %25 = tpu.memref_squeeze %24 : memref<1x12x16x128xf32, #tpu.memory_space<any>> -> memref<12x16x128xf32, #tpu.memory_space<any>>
      %c0_i32_20 = arith.constant 0 : i32
      %c0_i32_21 = arith.constant 0 : i32
      %26 = tpu.memref_slice %arg3[%23, %c0_i32_20, %c0_i32_21] : memref<24x16x128xf32, #tpu.memory_space<vmem>> -> memref<12x16x128xf32, #tpu.memory_space<vmem>>
      %27 = tpu.memref_slice %arg4[%20] : memref<2x!tpu.dma_semaphore, #tpu.memory_space<semaphore_mem>> -> memref<1x!tpu.dma_semaphore, #tpu.memory_space<semaphore_mem>>
      %28 = tpu.memref_squeeze %27 : memref<1x!tpu.dma_semaphore, #tpu.memory_space<semaphore_mem>> -> memref<!tpu.dma_semaphore, #tpu.memory_space<semaphore_mem>>
      tpu.wait_dma2 semaphore(%28 : memref<!tpu.dma_semaphore, #tpu.memory_space<semaphore_mem>>) src(%25 : memref<12x16x128xf32, #tpu.memory_space<any>>) dst(%26 : memref<12x16x128xf32, #tpu.memory_space<vmem>>)
      %c1_i32_22 = arith.constant 1 : i32
      %29 = arith.addi %arg5, %c1_i32_22 : i32
      %c2_i32_23 = arith.constant 2 : i32
      %30 = arith.cmpi slt, %29, %c2_i32_23 : i32
      %31 = arith.extui %30 : i1 to i32
      %c0_i32_24 = arith.constant 0 : i32
      %32 = arith.cmpi ne, %31, %c0_i32_24 : i32
      scf.if %32 {
        %c1_i32_31 = arith.constant 1 : i32
        %40 = arith.addi %arg5, %c1_i32_31 : i32
        %c1_i32_32 = arith.constant 1 : i32
        %41 = arith.subi %c1_i32_32, %20 : i32
        %c8_i32_33 = arith.constant 8 : i32
        %42 = arith.muli %40, %c8_i32_33 : i32
        %c4_i32_34 = arith.constant 4 : i32
        %43 = arith.minsi %42, %c4_i32_34 : i32
        %c12_i32_35 = arith.constant 12 : i32
        %44 = arith.muli %41, %c12_i32_35 : i32
        %c0_i32_36 = arith.constant 0 : i32
        %c0_i32_37 = arith.constant 0 : i32
        %45 = tpu.memref_slice %arg1[%arg0, %43, %c0_i32_36, %c0_i32_37] : memref<6x16x16x128xf32, #tpu.memory_space<any>> -> memref<1x12x16x128xf32, #tpu.memory_space<any>>
        %46 = tpu.memref_squeeze %45 : memref<1x12x16x128xf32, #tpu.memory_space<any>> -> memref<12x16x128xf32, #tpu.memory_space<any>>
        %c0_i32_38 = arith.constant 0 : i32
        %c0_i32_39 = arith.constant 0 : i32
        %47 = tpu.memref_slice %arg3[%44, %c0_i32_38, %c0_i32_39] : memref<24x16x128xf32, #tpu.memory_space<vmem>> -> memref<12x16x128xf32, #tpu.memory_space<vmem>>
        %48 = tpu.memref_slice %arg4[%41] : memref<2x!tpu.dma_semaphore, #tpu.memory_space<semaphore_mem>> -> memref<1x!tpu.dma_semaphore, #tpu.memory_space<semaphore_mem>>
        %49 = tpu.memref_squeeze %48 : memref<1x!tpu.dma_semaphore, #tpu.memory_space<semaphore_mem>> -> memref<!tpu.dma_semaphore, #tpu.memory_space<semaphore_mem>>
        tpu.enqueue_dma source(%46 : memref<12x16x128xf32, #tpu.memory_space<any>>) target(%47 : memref<12x16x128xf32, #tpu.memory_space<vmem>>) target_semaphore(%49 : memref<!tpu.dma_semaphore, #tpu.memory_space<semaphore_mem>>)
      } else {
      }
      %c12_i32_25 = arith.constant 12 : i32
      %33 = arith.muli %20, %c12_i32_25 : i32
      %c8_i32_26 = arith.constant 8 : i32
      %34 = arith.muli %arg5, %c8_i32_26 : i32
      %c8_i32_27 = arith.constant 8 : i32
      %35 = arith.muli %arg5, %c8_i32_27 : i32
      %c4_i32_28 = arith.constant 4 : i32
      %36 = arith.minsi %35, %c4_i32_28 : i32
      %37 = arith.subi %34, %36 : i32
      %c8_i32_29 = arith.constant 8 : i32
      %38 = arith.subi %c8_i32_29, %37 : i32
      %39 = arith.addi %37, %38 : i32
      %c1_i32_30 = arith.constant 1 : i32
      scf.for %arg6 = %37 to %39 step %c1_i32_30  : i32 {
        %c0_31 = arith.constant 0 : index
        %c0_32 = arith.constant 0 : index
        %c0_33 = arith.constant 0 : index
        %40 = vector.load %arg2[%c0_31, %c0_32, %c0_33] : memref<1x16x128xf32, #tpu.memory_space<vmem>>, vector<1x16x128xf32>
        %41 = vector.shape_cast %40 : vector<1x16x128xf32> to vector<16x128xf32>
        %42 = arith.addi %33, %arg6 : i32
        %c0_i32_34 = arith.constant 0 : i32
        %43 = arith.addi %42, %c0_i32_34 : i32
        %44 = arith.index_cast %43 : i32 to index
        %c0_35 = arith.constant 0 : index
        %c0_36 = arith.constant 0 : index
        %45 = vector.load %arg3[%44, %c0_35, %c0_36] : memref<24x16x128xf32, #tpu.memory_space<vmem>>, vector<1x16x128xf32>
        %46 = vector.shape_cast %45 : vector<1x16x128xf32> to vector<16x128xf32>
        %47 = arith.addi %33, %arg6 : i32
        %c1_i32_37 = arith.constant 1 : i32
        %48 = arith.addi %47, %c1_i32_37 : i32
        %49 = arith.index_cast %48 : i32 to index
        %c0_38 = arith.constant 0 : index
        %c0_39 = arith.constant 0 : index
        %50 = vector.load %arg3[%49, %c0_38, %c0_39] : memref<24x16x128xf32, #tpu.memory_space<vmem>>, vector<1x16x128xf32>
        %51 = vector.shape_cast %50 : vector<1x16x128xf32> to vector<16x128xf32>
        %52 = arith.addi %33, %arg6 : i32
        %c2_i32_40 = arith.constant 2 : i32
        %53 = arith.addi %52, %c2_i32_40 : i32
        %54 = arith.index_cast %53 : i32 to index
        %c0_41 = arith.constant 0 : index
        %c0_42 = arith.constant 0 : index
        %55 = vector.load %arg3[%54, %c0_41, %c0_42] : memref<24x16x128xf32, #tpu.memory_space<vmem>>, vector<1x16x128xf32>
        %56 = vector.shape_cast %55 : vector<1x16x128xf32> to vector<16x128xf32>
        %57 = arith.addi %33, %arg6 : i32
        %c3_i32 = arith.constant 3 : i32
        %58 = arith.addi %57, %c3_i32 : i32
        %59 = arith.index_cast %58 : i32 to index
        %c0_43 = arith.constant 0 : index
        %c0_44 = arith.constant 0 : index
        %60 = vector.load %arg3[%59, %c0_43, %c0_44] : memref<24x16x128xf32, #tpu.memory_space<vmem>>, vector<1x16x128xf32>
        %61 = vector.shape_cast %60 : vector<1x16x128xf32> to vector<16x128xf32>
        %62 = arith.addi %33, %arg6 : i32
        %c4_i32_45 = arith.constant 4 : i32
        %63 = arith.addi %62, %c4_i32_45 : i32
        %64 = arith.index_cast %63 : i32 to index
        %c0_46 = arith.constant 0 : index
        %c0_47 = arith.constant 0 : index
        %65 = vector.load %arg3[%64, %c0_46, %c0_47] : memref<24x16x128xf32, #tpu.memory_space<vmem>>, vector<1x16x128xf32>
        %66 = vector.shape_cast %65 : vector<1x16x128xf32> to vector<16x128xf32>
        %67 = arith.addf %56, %56 : vector<16x128xf32>
        %68 = arith.addf %66, %46 : vector<16x128xf32>
        %69 = arith.subf %68, %67 : vector<16x128xf32>
        %c14_i32 = arith.constant 14 : i32
        %70 = tpu.dynamic_rotate %56 by %c14_i32 dim 0 : vector<16x128xf32>, i32 -> vector<16x128xf32>
        %c2_i32_48 = arith.constant 2 : i32
        %71 = tpu.dynamic_rotate %56 by %c2_i32_48 dim 0 : vector<16x128xf32>, i32 -> vector<16x128xf32>
        %72 = arith.addf %70, %71 : vector<16x128xf32>
        %73 = arith.subf %72, %67 : vector<16x128xf32>
        %c126_i32 = arith.constant 126 : i32
        %74 = tpu.dynamic_rotate %56 by %c126_i32 dim 1 : vector<16x128xf32>, i32 -> vector<16x128xf32>
        %c2_i32_49 = arith.constant 2 : i32
        %75 = tpu.dynamic_rotate %56 by %c2_i32_49 dim 1 : vector<16x128xf32>, i32 -> vector<16x128xf32>
        %76 = arith.addf %74, %75 : vector<16x128xf32>
        %77 = arith.subf %76, %67 : vector<16x128xf32>
        %78 = arith.subf %61, %51 : vector<16x128xf32>
        %c15_i32 = arith.constant 15 : i32
        %79 = tpu.dynamic_rotate %78 by %c15_i32 dim 0 : vector<16x128xf32>, i32 -> vector<16x128xf32>
        %c1_i32_50 = arith.constant 1 : i32
        %80 = tpu.dynamic_rotate %78 by %c1_i32_50 dim 0 : vector<16x128xf32>, i32 -> vector<16x128xf32>
        %81 = arith.subf %79, %80 : vector<16x128xf32>
        %c127_i32 = arith.constant 127 : i32
        %82 = tpu.dynamic_rotate %78 by %c127_i32 dim 1 : vector<16x128xf32>, i32 -> vector<16x128xf32>
        %c1_i32_51 = arith.constant 1 : i32
        %83 = tpu.dynamic_rotate %78 by %c1_i32_51 dim 1 : vector<16x128xf32>, i32 -> vector<16x128xf32>
        %84 = arith.subf %82, %83 : vector<16x128xf32>
        %c15_i32_52 = arith.constant 15 : i32
        %85 = tpu.dynamic_rotate %56 by %c15_i32_52 dim 0 : vector<16x128xf32>, i32 -> vector<16x128xf32>
        %c1_i32_53 = arith.constant 1 : i32
        %86 = tpu.dynamic_rotate %56 by %c1_i32_53 dim 0 : vector<16x128xf32>, i32 -> vector<16x128xf32>
        %87 = arith.subf %85, %86 : vector<16x128xf32>
        %c127_i32_54 = arith.constant 127 : i32
        %88 = tpu.dynamic_rotate %87 by %c127_i32_54 dim 1 : vector<16x128xf32>, i32 -> vector<16x128xf32>
        %c1_i32_55 = arith.constant 1 : i32
        %89 = tpu.dynamic_rotate %87 by %c1_i32_55 dim 1 : vector<16x128xf32>, i32 -> vector<16x128xf32>
        %90 = arith.subf %88, %89 : vector<16x128xf32>
        %91 = arith.mulf %81, %81 : vector<16x128xf32>
        %92 = arith.mulf %84, %84 : vector<16x128xf32>
        %93 = arith.addf %91, %92 : vector<16x128xf32>
        %94 = arith.mulf %90, %90 : vector<16x128xf32>
        %95 = arith.addf %93, %94 : vector<16x128xf32>
        %96 = arith.mulf %69, %69 : vector<16x128xf32>
        %97 = arith.mulf %73, %73 : vector<16x128xf32>
        %98 = arith.addf %96, %97 : vector<16x128xf32>
        %99 = arith.mulf %77, %77 : vector<16x128xf32>
        %100 = arith.addf %98, %99 : vector<16x128xf32>
        %101 = arith.addf %100, %95 : vector<16x128xf32>
        %102 = arith.addf %101, %95 : vector<16x128xf32>
        %103 = arith.addf %41, %102 : vector<16x128xf32>
        %c0_56 = arith.constant 0 : index
        %c0_57 = arith.constant 0 : index
        %c0_58 = arith.constant 0 : index
        %104 = vector.load %arg2[%c0_56, %c0_57, %c0_58] : memref<1x16x128xf32, #tpu.memory_space<vmem>>, vector<1x16x128xf32>
        %105 = vector.shape_cast %104 : vector<1x16x128xf32> to vector<16x128xf32>
        %106 = vector.shape_cast %103 : vector<16x128xf32> to vector<1x16x128xf32>
        tpu.vector_store %arg2[%c0_56, %c0_57, %c0_58], %106 {strides = array<i32>} : memref<1x16x128xf32, #tpu.memory_space<vmem>>, vector<1x16x128xf32>,
      }
    }
    %c2_i32_10 = arith.constant 2 : i32
    return
  }
  func.func @transform_1(%arg0: i32) -> (i32, i32, i32) {
    %c0_i32 = arith.constant 0 : i32
    %c0_i32_0 = arith.constant 0 : i32
    %c0_i32_1 = arith.constant 0 : i32
    return %arg0, %c0_i32, %c0_i32_0 : i32, i32, i32
  }
}

</mosaic_0001>

<llo_original>
// kernel: tpu_custom_call.1
$region0: #{tpu_custom_call.1}
  #allocation0 [shape = 'u32[]', space=smem, size = 0x4, offset = 0x4, fixed_abs, tag = 'smem constant byte address 0x4 - core index']
  #allocation1 [shape = 'u32[144,128]{1,0:T(1,128)}', space=vmem, size = 0x12000, scoped, tag = 'internal scratch']
  #allocation2 [shape = 'f32[24,16,128]{2,1,0:T(8,128)}', space=vmem, size = 0x30000, scoped, tag = 'scratch operand']
  #allocation3 [shape = 's32[2]{0}', space=sflag, size = 0x8, scoped, tag = 'scratch operand']
  #allocation6 [shape = 's32[]', space=sflag, size = 0x4, offset = 0, fixed_abs, tag = 'sflag constant byte address 0x0 - dummy sync flag']
  #allocation7 [shape = 's32[]', space=sflag, size = 0x4, offset = 0, fixed_abs, tag = 'sflag constant byte address 0x0 - dummy sync flag']
  #allocation8 [shape = 'u32[]', space=smem, size = 0x4, offset = 0x44, fixed_abs, tag = 'smem constant byte address 0x44 - assertion arg 0']
  #allocation9 [shape = 'u32[]', space=smem, size = 0x4, offset = 0x48, fixed_abs, tag = 'smem constant byte address 0x48 - assertion arg 1']
  #allocation10 [shape = 's32[]', space=sflag, size = 0x4, offset = 0, fixed_abs, tag = 'sflag constant byte address 0x0 - dummy sync flag']
  #allocation11 [shape = 's32[]', space=sflag, size = 0x4, offset = 0, fixed_abs, tag = 'sflag constant byte address 0x0 - dummy sync flag']
  %s0 = inlined_call_operand.hbm [shape: f32[6,16,16,128], index: 0, kind: input, shape index: {}]
  %s1 = inlined_call_operand.hbm [shape: f32[6,16,128], index: 1, kind: output, shape index: {}]
  %s2 = sld [smem:[#allocation0]]
  $region51: #{tpu_custom_call.1} parent=0
    _
  %s4 = ssub.s32 1, %s2
  %s5 = scalar_select 0, %s4, %s2
  $region1: #{tpu_custom_call.1} parent=0
    #allocation4 [shape = 'u8[16384]{0}', space=vmem, size = 0x4000, scoped, tag = 'output window, operand 0']
    #allocation5 [shape = 's32[2]{0}', space=sflag, size = 0x8, scoped, tag = 'scoped memory for tpu_custom_call.1']
    %6 = vsyncpa [#allocation5], 0
    %s7 = scalar_lea.sflag [#allocation5], 1
    %8 = vsyncpa %s7, 0
    loop: start=0, step=1, limit=7
    $region2: #{tpu_custom_call.1} parent=1 // loop_pre_header
      _
    $region3: #{tpu_custom_call.1} parent=1 // loop_header
      %s10 = sphi 0, %s14
      %p11 = scmp.ge.s32.totalorder %s10, 7
      %s19 = sphi 0, %s21
      %s22 = sphi 0, %s19
      %s32 = sphi 0, %s22
    $region4: #{tpu_custom_call.1} parent=1 // loop_header_branch
      %13 = sbr.rel (%p11) target = $region8
    $region5: #{tpu_custom_call.1} parent=1 // loop_body
      %s15 = ssub.s32 %s10, 1
      %s16 = sadd.s32 %s10, 1
      %s17 = ssub.s32 %s10, %s16
      %p18 = scmp.eq.s32.totalorder %s17, 0
      %s20 = sadd.s32 %s19, 1
      %s21 = scalar_select %p18, %s19, %s20
      %p23 = pneg %p18
      %p24 = scmp.eq.s32.totalorder %s10, 5
      %p25 = por %p23, %p24
      %p26 = scmp.ne.s32.totalorder %s19, %s22
      %p27 = scmp.eq.s32.totalorder %s10, 0
      %p28 = por %p26, %p27
      %p29 = scmp.ne.s32.totalorder %s19, %s22
      %p30 = scmp.eq.s32.totalorder %s15, 5
      %p31 = por %p29, %p30
      %p33 = scmp.ne.s32.totalorder %s22, %s32
      %p34 = scmp.eq.s32.totalorder %s15, 0
      %p35 = por %p33, %p34
      %p36 = scmp.lt.s32.totalorder %s10, 6
      // Predicated region
      $region9: #{tpu_custom_call.1} parent=5 // pred_check
        %p37 = pneg %p36
      $region10: #{tpu_custom_call.1} parent=5 // pred_check_branch
        %39 = sbr.rel (%p37) target = $region12
      $region11: #{tpu_custom_call.1} parent=5 // pred_region
        %p40 = pneg %p28
        %p41 = pneg %p25
        %s42 = sand.u32 %s19, 1
        %s43 = scalar_lea.sflag [#allocation5], %s42
        %s44 = sand.u32 %s19, 1
        %s45 = smul.addr %s44, 16
        %s46 = scalar_lea.vmem [#allocation4], %s45
        %s47 = smul.u32 %s10, 256
        %s48 = smul.addr %s47, 16
        %s49 = scalar_lea.hbm %s0, %s48
        // Predicated region
        $region13: #{tpu_custom_call.1} parent=11 // pred_check
          _
        $region14: #{tpu_custom_call.1} parent=11 // pred_check_branch
          %51 = sbr.rel target = $region16
        $region15: #{tpu_custom_call.1} parent=11 // pred_region
          %52 = sst [smem:[#allocation8]] [#allocation7]
          %53 = sst [smem:[#allocation9]] [#allocation6]
        $region16: #{tpu_custom_call.1} parent=11 // pred_fallthru
          _
        %55 = shalt.err (0)
        %s57 = sshll.u32 [#allocation2], 4
        %s58 = int_to_ptr.vmem [resolvable:$true] %s57
        %60 = dma.hbm_to_vmem [thread:$0]  %s49, 3072, %s58, [#allocation3]
        %61 = vst [vmem:[%s46] sm:$0xff] 0.0
        %62 = vst [vmem:[%s46 + $0x8] sm:$0xff] 0.0
        loop: start=0, step=1, limit=2
        $region17: #{tpu_custom_call.1} parent=11 // loop_pre_header
          _
        $region18: #{tpu_custom_call.1} parent=11 // loop_header
          %s64 = sphi 0, %s68
          %p65 = scmp.ge.s32.totalorder %s64, 2
        $region19: #{tpu_custom_call.1} parent=11 // loop_header_branch
          %67 = sbr.rel (%p65) target = $region23
        $region20: #{tpu_custom_call.1} parent=11 // loop_body
          %p69 = scmp.lt.s32.totalorder %s64, 0
          %s70 = ssub.s32 0, %s64
          %s71 = scalar_select %p69, %s70, %s64
          %s72 = sand.u32 %s71, 1
          %s73 = ssub.s32 0, %s72
          %s74 = scalar_select %p69, %s73, %s72
          %p75 = scmp.ne.s32.totalorder %s74, 0
          %p76 = scmp.lt.s32.totalorder %s74, 0
          %p77 = pnand %p76, %p75
          %p78 = pneg %p77
          %s79 = sadd.s32 %s74, 2
          %s80 = scalar_select %p78, %s79, %s74
          %s81 = smul.u32 %s64, 8
          %p82 = scmp.lt.s32.totalorder %s81, 4
          %s83 = scalar_select %p82, %s81, 4
          %s84 = smul.u32 %s80, 12
          %s85 = scalar_lea.sflag [#allocation3], %s80
          %s86 = smul.u32 12, 16
          %s87 = smul.u32 %s86, 1
          %s88 = sshll.u32 %s87, 4
          %89 = dma.done %s85, %s88
          %s90 = sadd.s32 %s64, 1
          %p91 = scmp.lt.s32.totalorder %s90, 2
          // Predicated region
          $region24: #{tpu_custom_call.1} parent=20 // pred_check
            %p92 = pneg %p91
          $region25: #{tpu_custom_call.1} parent=20 // pred_check_branch
            %94 = sbr.rel (%p92) target = $region27
          $region26: #{tpu_custom_call.1} parent=20 // pred_region
            %s95 = ssub.s32 1, %s80
            %s96 = smul.u32 %s90, 8
            %p97 = scmp.lt.s32.totalorder %s96, 4
            %s98 = scalar_select %p97, %s96, 4
            %s99 = smul.u32 %s95, 12
            %s100 = smul.u32 %s98, 16
            %s101 = sadd.s32 %s100, %s47
            %s102 = smul.addr %s101, 16
            %s103 = scalar_lea.hbm %s0, %s102
            %s104 = smul.u32 %s99, 16
            %s105 = scalar_lea.vmem [#allocation2], %s104
            %s106 = scalar_lea.sflag [#allocation3], %s95
            // Predicated region
            $region28: #{tpu_custom_call.1} parent=26 // pred_check
              _
            $region29: #{tpu_custom_call.1} parent=26 // pred_check_branch
              %108 = sbr.rel target = $region31
            $region30: #{tpu_custom_call.1} parent=26 // pred_region
              %109 = sst [smem:[#allocation8]] [#allocation11]
              %110 = sst [smem:[#allocation9]] [#allocation10]
            $region31: #{tpu_custom_call.1} parent=26 // pred_fallthru
              _
            %112 = shalt.err (0)
            %s114 = sshll.u32 %s105, 4
            %s115 = int_to_ptr.vmem [resolvable:$true] %s114
            %117 = dma.hbm_to_vmem [thread:$0]  %s103, 3072, %s115, %s106
          $region27: #{tpu_custom_call.1} parent=20 // pred_fallthru
            _
          %s118 = ssub.s32 %s81, %s83
          // While loop
          $region32: #{tpu_custom_call.1} parent=20 // loop_pre_header
            _
          $region33: #{tpu_custom_call.1} parent=20 // loop_header
            %s120 = sphi %s118, %s122
            %p121 = scmp.ge.s32.totalorder %s120, 8
          $region34: #{tpu_custom_call.1} parent=20 // loop_header_branch
            %124 = sbr.rel (%p121) target = $region38
          $region35: #{tpu_custom_call.1} parent=20 // loop_body
            %v125 = vld [vmem:[%s46] sm:$0xff]
            %v126 = vld [vmem:[%s46 + $0x8] sm:$0xff]
            %s127 = sadd.s32 %s84, %s120
            %s128 = smul.u32 %s127, 16
            %s129 = scalar_lea.vmem [#allocation2], %s128
            %v130 = vld [vmem:[%s129] sm:$0xff]
            %v131 = vld [vmem:[%s129 + $0x8] sm:$0xff]
            %s132 = sadd.s32 %s127, 1
            %s133 = smul.u32 %s132, 16
            %s134 = scalar_lea.vmem [#allocation2], %s133
            %v135 = vld [vmem:[%s134] sm:$0xff]
            %v136 = vld [vmem:[%s134 + $0x8] sm:$0xff]
            %s137 = sadd.s32 %s127, 2
            %s138 = smul.u32 %s137, 16
            %s139 = scalar_lea.vmem [#allocation2], %s138
            %v140 = vld [vmem:[%s139] sm:$0xff]
            %v141 = vld [vmem:[%s139 + $0x8] sm:$0xff]
            %s142 = sadd.s32 %s127, 3
            %s143 = smul.u32 %s142, 16
            %s144 = scalar_lea.vmem [#allocation2], %s143
            %v145 = vld [vmem:[%s144] sm:$0xff]
            %v146 = vld [vmem:[%s144 + $0x8] sm:$0xff]
            %s147 = sadd.s32 %s127, 4
            %s148 = smul.u32 %s147, 16
            %s149 = scalar_lea.vmem [#allocation2], %s148
            %v150 = vld [vmem:[%s149] sm:$0xff]
            %v151 = vld [vmem:[%s149 + $0x8] sm:$0xff]
            %v152 = vadd.f32 %v140, %v140
            %v153 = vadd.f32 %v141, %v141
            %v154 = vadd.f32 %v150, %v130
            %v155 = vadd.f32 %v151, %v131
            %v156 = vsub.f32 %v154, %v152
            %v157 = vsub.f32 %v155, %v153
            %v158 = vrot.slane %v140, 2
            %v159 = vrot.slane %v141, 2
            %v160 = vlaneseq
            %v161 = vshrl.u32 %v160, 7
            %vm162 = vcmp.lt.s32.totalorder %v161, 6
            %v163 = vsel %vm162, %v158, %v159
            %v164 = vsel %vm162, %v159, %v158
            %v165 = vrot.slane %v140, 6
            %v166 = vrot.slane %v141, 6
            %vm167 = vcmp.lt.s32.totalorder %v161, 2
            %v168 = vsel %vm167, %v165, %v166
            %v169 = vsel %vm167, %v166, %v165
            %v170 = vadd.f32 %v163, %v169
            %v171 = vadd.f32 %v164, %v168
            %v172 = vsub.f32 %v170, %v152
            %v173 = vsub.f32 %v171, %v153
            %174 = vrot.lane.b32.xlu0 %v140, 126
            %v175 = vpop.permute.xlu0 %174
            %176 = vrot.lane.b32.xlu0 %v141, 126
            %v177 = vpop.permute.xlu0 %176
            %178 = vrot.lane.b32.xlu0 %v140, 2
            %v179 = vpop.permute.xlu0 %178
            %180 = vrot.lane.b32.xlu0 %v141, 2
            %v181 = vpop.permute.xlu0 %180
            %v182 = vadd.f32 %v175, %v179
            %v183 = vadd.f32 %v177, %v181
            %v184 = vsub.f32 %v182, %v152
            %v185 = vsub.f32 %v183, %v153
            %v186 = vsub.f32 %v145, %v135
            %v187 = vsub.f32 %v146, %v136
            %v188 = vrot.slane %v186, 1
            %v189 = vrot.slane %v187, 1
            %vm190 = vcmp.lt.s32.totalorder %v161, 7
            %v191 = vsel %vm190, %v188, %v189
            %v192 = vsel %vm190, %v189, %v188
            %v193 = vrot.slane %v186, 7
            %v194 = vrot.slane %v187, 7
            %vm195 = vcmp.lt.s32.totalorder %v161, 1
            %v196 = vsel %vm195, %v193, %v194
            %v197 = vsel %vm195, %v194, %v193
            %v198 = vsub.f32 %v191, %v197
            %v199 = vsub.f32 %v192, %v196
            %200 = vrot.lane.b32.xlu0 %v186, 127
            %v201 = vpop.permute.xlu0 %200
            %202 = vrot.lane.b32.xlu0 %v187, 127
            %v203 = vpop.permute.xlu0 %202
            %204 = vrot.lane.b32.xlu0 %v186, 1
            %v205 = vpop.permute.xlu0 %204
            %206 = vrot.lane.b32.xlu0 %v187, 1
            %v207 = vpop.permute.xlu0 %206
            %v208 = vsub.f32 %v201, %v205
            %v209 = vsub.f32 %v203, %v207
            %v210 = vrot.slane %v140, 1
            %v211 = vrot.slane %v141, 1
            %v212 = vsel %vm190, %v210, %v211
            %v213 = vsel %vm190, %v211, %v210
            %v214 = vrot.slane %v140, 7
            %v215 = vrot.slane %v141, 7
            %v216 = vsel %vm195, %v214, %v215
            %v217 = vsel %vm195, %v215, %v214
            %v218 = vsub.f32 %v212, %v217
            %v219 = vsub.f32 %v213, %v216
            %220 = vrot.lane.b32.xlu0 %v218, 127
            %v221 = vpop.permute.xlu0 %220
            %222 = vrot.lane.b32.xlu0 %v219, 127
            %v223 = vpop.permute.xlu0 %222
            %224 = vrot.lane.b32.xlu0 %v218, 1
            %v225 = vpop.permute.xlu0 %224
            %226 = vrot.lane.b32.xlu0 %v219, 1
            %v227 = vpop.permute.xlu0 %226
            %v228 = vsub.f32 %v221, %v225
            %v229 = vsub.f32 %v223, %v227
            %v230 = vmul.f32 %v198, %v198
            %v231 = vmul.f32 %v199, %v199
            %v232 = vmul.f32 %v208, %v208
            %v233 = vmul.f32 %v209, %v209
            %v234 = vadd.f32 %v230, %v232
            %v235 = vadd.f32 %v231, %v233
            %v236 = vmul.f32 %v228, %v228
            %v237 = vmul.f32 %v229, %v229
            %v238 = vadd.f32 %v234, %v236
            %v239 = vadd.f32 %v235, %v237
            %v240 = vmul.f32 %v156, %v156
            %v241 = vmul.f32 %v157, %v157
            %v242 = vmul.f32 %v172, %v172
            %v243 = vmul.f32 %v173, %v173
            %v244 = vadd.f32 %v240, %v242
            %v245 = vadd.f32 %v241, %v243
            %v246 = vmul.f32 %v184, %v184
            %v247 = vmul.f32 %v185, %v185
            %v248 = vadd.f32 %v244, %v246
            %v249 = vadd.f32 %v245, %v247
            %v250 = vadd.f32 %v248, %v238
            %v251 = vadd.f32 %v249, %v239
            %v252 = vadd.f32 %v250, %v238
            %v253 = vadd.f32 %v251, %v239
            %v254 = vadd.f32 %v125, %v252
            %v255 = vadd.f32 %v126, %v253
            %256 = vst [vmem:[%s46] sm:$0xff] %v254
            %257 = vst [vmem:[%s46 + $0x8] sm:$0xff] %v255
          $region36: #{tpu_custom_call.1} parent=20 // loop_footer
            %s122 = sadd.s32 %s120, 1
          $region37: #{tpu_custom_call.1} parent=20 // loop_footer_branch
            %119 = sbr.rel target = $region33
          $region38: #{tpu_custom_call.1} parent=20 // loop_exit
            _
        $region21: #{tpu_custom_call.1} parent=11 // loop_footer
          %s68 = sadd.s32 1, %s64
        $region22: #{tpu_custom_call.1} parent=11 // loop_footer_branch
          %63 = sbr.rel target = $region18
        $region23: #{tpu_custom_call.1} parent=11 // loop_exit
          _
        %s258 = sand.u32 %s19, 1
        %s259 = scalar_lea.sflag [#allocation5], %s258
        %s260 = sand.u32 %s19, 1
        %s261 = smul.addr %s260, 16
        %s262 = scalar_lea.vmem [#allocation4], %s261
        // Predicated region
        $region39: #{tpu_custom_call.1} parent=11 // pred_check
          %p263 = pneg %p25
        $region40: #{tpu_custom_call.1} parent=11 // pred_check_branch
          %265 = sbr.rel (%p263) target = $region42
        $region41: #{tpu_custom_call.1} parent=11 // pred_region
          %s267 = ssub.s32 256, 256
          %268 = vsyncadd %s259, %s267
          %s269 = smul.addr %s10, 2
          %s270 = smul.addr %s269, 128
          %s271 = scalar_lea.hbm %s1, %s270
          %s272 = sshll.u32 %s262, 4
          %s273 = int_to_ptr.vmem [resolvable:$true] %s272
          %278 = dma.vmem_to_hbm [thread:$0]  %s273, 256, %s271, %s259, 128, 128, 8
        $region42: #{tpu_custom_call.1} parent=11 // pred_fallthru
          _
      $region12: #{tpu_custom_call.1} parent=5 // pred_fallthru
        _
      %p279 = scmp.le.s32.totalorder 1, %s10
      // Predicated region
      $region43: #{tpu_custom_call.1} parent=5 // pred_check
        %p280 = pneg %p279
      $region44: #{tpu_custom_call.1} parent=5 // pred_check_branch
        %282 = sbr.rel (%p280) target = $region46
      $region45: #{tpu_custom_call.1} parent=5 // pred_region
        %s283 = ssub.s32 %s10, 1
        // Predicated region
        $region47: #{tpu_custom_call.1} parent=45 // pred_check
          %p284 = pneg %p31
        $region48: #{tpu_custom_call.1} parent=45 // pred_check_branch
          %286 = sbr.rel (%p284) target = $region50
        $region49: #{tpu_custom_call.1} parent=45 // pred_region
          %s287 = sand.u32 %s22, 1
          %s288 = scalar_lea.sflag [#allocation5], %s287
          %s289 = sand.u32 %s22, 1
          %s290 = smul.addr %s289, 16
          %s291 = scalar_lea.vmem [#allocation4], %s290
          %292 = dma.done %s288, 256
        $region50: #{tpu_custom_call.1} parent=45 // pred_fallthru
          _
      $region46: #{tpu_custom_call.1} parent=5 // pred_fallthru
        _
    $region6: #{tpu_custom_call.1} parent=1 // loop_footer
      %s14 = sadd.s32 1, %s10
    $region7: #{tpu_custom_call.1} parent=1 // loop_footer_branch
      %9 = sbr.rel target = $region3
    $region8: #{tpu_custom_call.1} parent=1 // loop_exit
      _
    %293 = vsyncpa [#allocation5], 1
    %s294 = scalar_lea.sflag [#allocation5], 1
    %295 = vsyncpa %s294, 1
  %296 = vsyncmov [#allocation3]
  %s297 = vpop.sfrf %296
  %p298 = scmp.eq.s32.totalorder %s297, 0
  %p299 = pneg %p298
  %301 = shalt.err (%p299)
  %s302 = scalar_lea.sflag [#allocation3], 1
  %303 = vsyncmov %s302
  %s304 = vpop.sfrf %303
  %p305 = scmp.eq.s32.totalorder %s304, 0
  %p306 = pneg %p305
  %308 = shalt.err (%p306)

</llo_original>
